<compile_context>
chip_gen: v6e
topology: v6e:2x2x1
jax: 0.10.0
libtpu: 0.0.40
codegen_flags: <defaults>
</compile_context>

<pallas_src>
import jax
import jax.numpy as jnp
from jax.experimental import pallas as pl
from jax.experimental.pallas import tpu as pltpu


def _scale_kernel(x_ref, w_ref, o_ref):
    # x: (rb, cb); w: (rb, 1) or (1, cb) -> single full-vreg VPU multiply.
    o_ref[...] = x_ref[...] * w_ref[...]


def _scale_bias_kernel(x_ref, w_ref, b_ref, o_ref):
    # x: (rb, cb); w: (rb, 1) or (1, cb); b: (1, cb) -> one VPU multiply-add.
    o_ref[...] = x_ref[...] * w_ref[...] + b_ref[...]


def _target_block_bytes():
    """Per-generation HBM-streaming block budget."""
    kind = ""
    try:
        kind = jax.devices()[0].device_kind.lower()
    except Exception:
        pass
    if "v5" in kind or "v4" in kind or "v3" in kind or "v2" in kind:
        return 2 * 1024 * 1024  # ~0.8 TB/s HBM: 2 MiB blocks already ~roofline
    # v6e / v7x: larger blocks amortize the ~0.35us per-grid-step overhead.
    # 4 MiB * (3 in + 3 out buffers) = 24 MiB stays under v7x's 32 MiB default
    # scoped VMEM and well under its 64 MiB physical VMEM per TC.
    return 4 * 1024 * 1024


def _sublane_pack(itemsize):
    # f32 -> 8, bf16/f16 -> 16, int8/fp8 -> 32 (sub-32-bit packs along sublanes).
    return max(8, 32 // max(1, itemsize))


def _largest_lane_block(cols, cap_lanes):
    """Largest multiple of 128 <= cap_lanes, preferring exact divisors of cols."""
    cap = min(cap_lanes, (cols // 128) * 128)
    cap = max(cap, 128)
    cb = cap
    while cb >= 128:
        if cols % cb == 0:
            return cb
        cb -= 128
    return cap


def _choose_blocks(rows, cols, itemsize, pack, target_bytes, min_blocks=4):
    # --- column block: full extent if `pack` rows of it fit the budget, else
    # the largest 128-lane multiple (preferring divisors of cols -> unmasked
    # full-lane vst on every block).
    if cols <= 128 or pack * cols * itemsize <= target_bytes:
        cb = cols
    else:
        cap_lanes = max(128, (target_bytes // (pack * itemsize) // 128) * 128)
        cb = _largest_lane_block(cols, cap_lanes)
    # --- row block: largest pack-multiple that fits, or the full row extent.
    rb = target_bytes // max(1, cb * itemsize)
    rb = max(pack, (rb // pack) * pack)
    if rb >= rows:
        rb = rows
    # --- make sure mid/large tensors produce >= min_blocks grid blocks so both
    # v7x TensorCores get "parallel" work (no-op on single-TC v5e/v6e).
    if rows * cols * itemsize >= (1 << 20):
        def nblocks(r, c):
            return pl.cdiv(rows, r) * pl.cdiv(cols, c)

        if nblocks(rb, cb) < min_blocks and rows >= 2 * pack:
            want = min(min_blocks, rows // pack)
            new_rb = pl.cdiv(rows, want)
            new_rb = max(pack, ((new_rb + pack - 1) // pack) * pack)
            rb = min(rb, new_rb)
        if nblocks(rb, cb) < min_blocks and cols >= 2 * 128:
            want = min(min_blocks, cols // 128)
            new_cb = pl.cdiv(cols, want)
            new_cb = max(128, ((new_cb + 127) // 128) * 128)
            cb = min(cb, new_cb)
    return rb, cb


def _stream(kernel, x2, params, param_specs, rb, cb, flops, extra_bytes):
    """Run the 2-D streaming pallas_call with triple-buffered x/out blocks."""
    rows, cols = x2.shape
    dtype = x2.dtype
    itemsize = jnp.dtype(dtype).itemsize
    grid = (pl.cdiv(rows, rb), pl.cdiv(cols, cb))
    block_bytes = rb * cb * itemsize
    vmem_limit = int(min(48 * 1024 * 1024,
                         max(16 * 1024 * 1024, 8 * block_bytes + (2 << 20))))
    cparams = pltpu.CompilerParams(
        dimension_semantics=("parallel", "parallel"),
        vmem_limit_bytes=vmem_limit,
    )
    cost = pl.CostEstimate(
        flops=int(flops),
        transcendentals=0,
        bytes_accessed=int(2 * rows * cols * itemsize + extra_bytes),
    )
    out_shape = jax.ShapeDtypeStruct((rows, cols), dtype)

    def build(pipeline_mode):
        kw = {} if pipeline_mode is None else {"pipeline_mode": pipeline_mode}
        x_spec = pl.BlockSpec((rb, cb), lambda i, j: (i, j), **kw)
        o_spec = pl.BlockSpec((rb, cb), lambda i, j: (i, j), **kw)
        return pl.pallas_call(
            kernel,
            out_shape=out_shape,
            grid=grid,
            in_specs=[x_spec] + param_specs,
            out_specs=o_spec,
            compiler_params=cparams,
            cost_estimate=cost,
        )

    try:
        # Per-block compute is a single VPU op, so any DMA issue/turnaround gap
        # between grid steps is fully exposed; a third buffer hides it.
        return build(pl.Buffered(3))(x2, *params)
    except Exception:
        # TODO(synk): Buffered(3) rejected by this jax/libtpu combo; fall back
        # to the default double-buffered pipeline (previously verified config).
        return build(None)(x2, *params)


def scale_layer(x, weight, bias=None):
    """x: (N, C, H, W); weight: (C,); bias: (C,) or None."""
    N, C, H, W = x.shape
    dtype = x.dtype
    itemsize = jnp.dtype(dtype).itemsize
    pack = _sublane_pack(itemsize)
    target = _target_block_bytes()
    hw = H * W

    w = weight.astype(dtype)
    b = None if bias is None else bias.astype(dtype)
    if b is not None:
        # PyTorch `+ self.bias` broadcasts over the last (W) axis of NCHW.
        assert W == C, (
            "bias (C,) broadcasts over W in the PyTorch module; needs W == num_features"
        )

    if hw >= 128:
        # ---- layout A: lane axis = H*W; row r = (n, c), c = r % C. ----
        rows, cols = N * C, hw
        x2 = x.reshape(rows, cols)
        rb, cb = _choose_blocks(rows, cols, itemsize, pack, target)
        w_col = jnp.tile(w, N).reshape(rows, 1)            # weight[r % C]
        params = [w_col]
        # Weight block index (i, 0) is constant across the inner column axis,
        # so Pallas does not re-fetch it per step (keep cols trailing in grid).
        param_specs = [pl.BlockSpec((rb, 1), lambda i, j: (i, 0))]
        extra = rows * itemsize
        if b is not None:
            b_row = jnp.tile(b, H).reshape(1, cols)        # bias[j % W]
            params.append(b_row)
            param_specs.append(pl.BlockSpec((1, cb), lambda i, j: (0, j)))
            extra += cols * itemsize
    else:
        # ---- layout B (lane-sparse H*W < 128): lane axis = C*H*W. ----
        # Keeps stores full-lane vst; no transpose needed since NCHW is already
        # contiguous as (N, C*H*W).
        rows, cols = N, C * hw
        x2 = x.reshape(rows, cols)
        rb, cb = _choose_blocks(rows, cols, itemsize, pack, target)
        w_row = jnp.repeat(w, hw).reshape(1, cols)         # weight[j // (H*W)]
        params = [w_row]
        param_specs = [pl.BlockSpec((1, cb), lambda i, j: (0, j))]
        extra = cols * itemsize
        if b is not None:
            b_row = jnp.tile(b, C * H).reshape(1, cols)    # bias[j % W]
            params.append(b_row)
            param_specs.append(pl.BlockSpec((1, cb), lambda i, j: (0, j)))
            extra += cols * itemsize

    kernel = _scale_kernel if b is None else _scale_bias_kernel
    flops = rows * cols * (1 if b is None else 2)
    out2 = _stream(kernel, x2, params, param_specs, rb, cb, flops, extra)
    return out2.reshape(N, C, H, W)


def _reference(x, weight, bias=None):
    C = weight.shape[0]
    y = x * weight.reshape(1, C, 1, 1).astype(x.dtype)
    if bias is not None:
        y = y + bias.astype(x.dtype)  # broadcasts over W, like PyTorch
    return y


if __name__ == "__main__":
    key = jax.random.PRNGKey(0)

    # Module-default params: weight = ones, bias = zeros (use_bias=True).
    num_features = 16
    N, C, H, W = 2, num_features, 8, num_features  # W == C required by the bias quirk
    x = jax.random.normal(key, (N, C, H, W), dtype=jnp.float32)
    weight = jnp.ones((num_features,), dtype=jnp.float32)
    bias = jnp.zeros((num_features,), dtype=jnp.float32)
    out = scale_layer(x, weight, bias)
    jax.block_until_ready(out)
    assert out.shape == x.shape and out.dtype == x.dtype
    assert jnp.allclose(out, _reference(x, weight, bias), atol=1e-6)

    # Non-trivial params, same (bias) kernel path.
    kw, kb = jax.random.split(jax.random.PRNGKey(1))
    w_rand = jax.random.normal(kw, (num_features,), dtype=jnp.float32)
    b_rand = jax.random.normal(kb, (num_features,), dtype=jnp.float32)
    out2 = scale_layer(x, w_rand, b_rand)
    jax.block_until_ready(out2)
    assert jnp.allclose(out2, _reference(x, w_rand, b_rand), atol=1e-5)

    # use_bias=False, wide lane-dense tile (layout A, single block).
    x3 = jax.random.normal(jax.random.PRNGKey(2), (2, 4, 16, 256), dtype=jnp.float32)
    w3 = jax.random.normal(jax.random.PRNGKey(3), (4,), dtype=jnp.float32)
    out3 = scale_layer(x3, w3, None)
    jax.block_until_ready(out3)
    assert jnp.allclose(out3, _reference(x3, w3, None), atol=1e-5)

    # use_bias=False, >=1 MiB tensor -> multi-block "parallel" grid (v7x 2-TC path).
    x4 = jax.random.normal(jax.random.PRNGKey(4), (4, 64, 32, 128), dtype=jnp.float32)
    w4 = jax.random.normal(jax.random.PRNGKey(5), (64,), dtype=jnp.float32)
    out4 = scale_layer(x4, w4, None)
    jax.block_until_ready(out4)
    assert jnp.allclose(out4, _reference(x4, w4, None), atol=1e-5)

    # Lane-sparse H*W < 128 regime (layout B), with the bias quirk (W == C = 7).
    x5 = jax.random.normal(jax.random.PRNGKey(6), (2, 7, 4, 7), dtype=jnp.float32)
    w5 = jax.random.normal(jax.random.PRNGKey(7), (7,), dtype=jnp.float32)
    b5 = jax.random.normal(jax.random.PRNGKey(8), (7,), dtype=jnp.float32)
    out5 = scale_layer(x5, w5, b5)
    jax.block_until_ready(out5)
    assert jnp.allclose(out5, _reference(x5, w5, b5), atol=1e-5)

    # bf16 path exercises the 16-row sublane pack (no bias, layout A).
    x6 = jax.random.normal(jax.random.PRNGKey(9), (2, 8, 16, 256)).astype(jnp.bfloat16)
    w6 = jax.random.normal(jax.random.PRNGKey(10), (8,)).astype(jnp.bfloat16)
    out6 = scale_layer(x6, w6, None)
    jax.block_until_ready(out6)
    assert out6.dtype == jnp.bfloat16
    assert jnp.allclose(out6.astype(jnp.float32),
                        _reference(x6, w6, None).astype(jnp.float32), atol=1e-2)

    print("KERNEL_OK")
</pallas_src>

<mosaic_0001>
module attributes {stable_mosaic.version = 11 : i64} {
  func.func @_scale_bias_kernel(%arg0: i32, %arg1: i32, %arg2: memref<32x128xf32, #tpu.memory_space<vmem>>, %arg3: memref<32x1xf32, #tpu.memory_space<vmem>>, %arg4: memref<1x128xf32, #tpu.memory_space<vmem>>, %arg5: memref<32x128xf32, #tpu.memory_space<vmem>>) attributes {dimension_semantics = [#tpu.dimension_semantics<parallel>, #tpu.dimension_semantics<parallel>], iteration_bounds = array<i64: 1, 1>, scalar_prefetch = 0 : i64, scratch_operands = 0 : i64, tpu.core_type = #tpu.core_type<tc>, window_params = [{transform_indices = @transform_0, window_bounds = array<i64: 32, 128>}, {transform_indices = @transform_1, window_bounds = array<i64: 32, 1>}, {transform_indices = @transform_2, window_bounds = array<i64: 1, 128>}, {transform_indices = @transform_3, window_bounds = array<i64: 32, 128>}]} {
    %c0 = arith.constant 0 : index
    %c0_0 = arith.constant 0 : index
    %0 = vector.load %arg2[%c0, %c0_0] : memref<32x128xf32, #tpu.memory_space<vmem>>, vector<32x128xf32>
    %c0_1 = arith.constant 0 : index
    %c0_2 = arith.constant 0 : index
    %1 = vector.load %arg3[%c0_1, %c0_2] : memref<32x1xf32, #tpu.memory_space<vmem>>, vector<32x1xf32>
    %2 = vector.broadcast %1 : vector<32x1xf32> to vector<32x128xf32>
    %3 = arith.mulf %0, %2 : vector<32x128xf32>
    %c0_3 = arith.constant 0 : index
    %c0_4 = arith.constant 0 : index
    %4 = vector.load %arg4[%c0_3, %c0_4] : memref<1x128xf32, #tpu.memory_space<vmem>>, vector<1x128xf32>
    %5 = vector.broadcast %4 : vector<1x128xf32> to vector<32x128xf32>
    %6 = arith.addf %3, %5 : vector<32x128xf32>
    %c0_5 = arith.constant 0 : index
    %c0_6 = arith.constant 0 : index
    %7 = vector.load %arg5[%c0_5, %c0_6] : memref<32x128xf32, #tpu.memory_space<vmem>>, vector<32x128xf32>
    tpu.vector_store %arg5[%c0_5, %c0_6], %6 {strides = array<i32>} : memref<32x128xf32, #tpu.memory_space<vmem>>, vector<32x128xf32>,
    return
  }
  func.func @transform_0(%arg0: i32, %arg1: i32) -> (i32, i32) {
    %c0_i32 = arith.constant 0 : i32
    return %arg0, %arg1 : i32, i32
  }
  func.func @transform_1(%arg0: i32, %arg1: i32) -> (i32, i32) {
    %c0_i32 = arith.constant 0 : i32
    %c0_i32_0 = arith.constant 0 : i32
    return %arg0, %c0_i32 : i32, i32
  }
  func.func @transform_2(%arg0: i32, %arg1: i32) -> (i32, i32) {
    %c0_i32 = arith.constant 0 : i32
    %c0_i32_0 = arith.constant 0 : i32
    return %c0_i32, %arg1 : i32, i32
  }
  func.func @transform_3(%arg0: i32, %arg1: i32) -> (i32, i32) {
    %c0_i32 = arith.constant 0 : i32
    return %arg0, %arg1 : i32, i32
  }
}

</mosaic_0001>

<llo_original>
// kernel: tpu_custom_call.1
$region0: #{tpu_custom_call.1}
  #allocation0 [shape = 'u32[]', space=smem, size = 0x4, offset = 0x4, fixed_abs, tag = 'smem constant byte address 0x4 - core index']
  #allocation1 [shape = 'u32[144,128]{1,0:T(1,128)}', space=vmem, size = 0x12000, scoped, tag = 'internal scratch']
  %s0 = inlined_call_operand.vmem [shape: f32[32,128], index: 0, kind: input, shape index: {}]
  %s1 = inlined_call_operand.vmem [shape: f32[32,1], index: 1, kind: input, shape index: {}]
  %s2 = inlined_call_operand.vmem [shape: f32[1,128], index: 2, kind: input, shape index: {}]
  %s3 = inlined_call_operand.hbm [shape: f32[32,128], index: 3, kind: output, shape index: {}]
  %s4 = sld [smem:[#allocation0]]
  $region22: #{tpu_custom_call.1} parent=0
    _
  %s6 = ssub.s32 1, %s4
  %s7 = scalar_select 0, %s6, %s4
  $region1: #{tpu_custom_call.1} parent=0
    #allocation2 [shape = 'u8[16384]{0}', space=vmem, size = 0x4000, scoped, tag = 'output window, operand 0, single buffered']
    #allocation3 [shape = 's32[1]{0}', space=sflag, size = 0x4, scoped, tag = 'scoped memory for tpu_custom_call.1']
    %8 = vsyncpa [#allocation3], 0
    // Predicated region
    $region2: #{tpu_custom_call.1} parent=1 // pred_check
      _
    $region3: #{tpu_custom_call.1} parent=1 // pred_check_branch
      %10 = sbr.rel (0) target = $region5
    $region4: #{tpu_custom_call.1} parent=1 // pred_region
      _
    $region5: #{tpu_custom_call.1} parent=1 // pred_fallthru
      _
    // Predicated region
    $region6: #{tpu_custom_call.1} parent=1 // pred_check
      _
    $region7: #{tpu_custom_call.1} parent=1 // pred_check_branch
      %12 = sbr.rel (0) target = $region9
    $region8: #{tpu_custom_call.1} parent=1 // pred_region
      _
    $region9: #{tpu_custom_call.1} parent=1 // pred_fallthru
      _
    // Predicated region
    $region10: #{tpu_custom_call.1} parent=1 // pred_check
      _
    $region11: #{tpu_custom_call.1} parent=1 // pred_check_branch
      %14 = sbr.rel (0) target = $region13
    $region12: #{tpu_custom_call.1} parent=1 // pred_region
      _
    $region13: #{tpu_custom_call.1} parent=1 // pred_fallthru
      _
    %v15 = vld [vmem:[%s0] sm:$0xff]
    %v16 = vld [vmem:[%s0 + $0x8] sm:$0xff]
    %v17 = vld [vmem:[%s0 + $0x10] sm:$0xff]
    %v18 = vld [vmem:[%s0 + $0x18] sm:$0xff]
    %v19 = vld [vmem:[%s1] sm:$0xff]
    %v20 = vld [vmem:[%s1 + $0x8] sm:$0xff]
    %v21 = vld [vmem:[%s1 + $0x10] sm:$0xff]
    %v22 = vld [vmem:[%s1 + $0x18] sm:$0xff]
    %24 = vset.pattern.permute.xlu0 0
    %25 = vperm.xlu0 %24, %v19
    %v26 = vpop.permute.xlu0 %25
    %29 = vset.pattern.permute.xlu0 0
    %30 = vperm.xlu0 %29, %v20
    %v31 = vpop.permute.xlu0 %30
    %34 = vset.pattern.permute.xlu0 0
    %35 = vperm.xlu0 %34, %v21
    %v36 = vpop.permute.xlu0 %35
    %39 = vset.pattern.permute.xlu0 0
    %40 = vperm.xlu0 %39, %v22
    %v41 = vpop.permute.xlu0 %40
    %v43 = vmul.f32 %v15, %v26
    %v44 = vmul.f32 %v16, %v31
    %v45 = vmul.f32 %v17, %v36
    %v46 = vmul.f32 %v18, %v41
    %v47 = vld [vmem:[%s2] sm:$0x1]
    %v49 = vlaneseq
    %v50 = vshrl.u32 %v49, 7
    %v51 = vsub.s32 0, %v50
    %v52 = vrot.slane %v47, %v51
    %v54 = vadd.f32 %v43, %v52
    %v55 = vadd.f32 %v44, %v52
    %v56 = vadd.f32 %v45, %v52
    %v57 = vadd.f32 %v46, %v52
    %58 = vst [vmem:[#allocation2] sm:$0xff] %v54
    %59 = vst [vmem:[#allocation2 + $0x8] sm:$0xff] %v55
    %60 = vst [vmem:[#allocation2 + $0x10] sm:$0xff] %v56
    %61 = vst [vmem:[#allocation2 + $0x18] sm:$0xff] %v57
    // Predicated region
    $region14: #{tpu_custom_call.1} parent=1 // pred_check
      _
    $region15: #{tpu_custom_call.1} parent=1 // pred_check_branch
      %63 = sbr.rel (0) target = $region17
    $region16: #{tpu_custom_call.1} parent=1 // pred_region
      %s65 = ssub.s32 512, 512
      %66 = vsyncadd [#allocation3], %s65
      %s67 = sshll.u32 [#allocation2], 4
      %s68 = int_to_ptr.vmem [resolvable:$true] %s67
      %73 = dma.vmem_to_hbm [thread:$0]  %s68, 512, %s3, [#allocation3], 128, 128, 8
    $region17: #{tpu_custom_call.1} parent=1 // pred_fallthru
      _
    // Predicated region
    $region18: #{tpu_custom_call.1} parent=1 // pred_check
      _
    $region19: #{tpu_custom_call.1} parent=1 // pred_check_branch
      %75 = sbr.rel (0) target = $region21
    $region20: #{tpu_custom_call.1} parent=1 // pred_region
      %76 = dma.done [#allocation3], 512
    $region21: #{tpu_custom_call.1} parent=1 // pred_fallthru
      _
    %77 = vsyncpa [#allocation3], 1

</llo_original>
